<compile_context>
chip_gen: v6e
topology: v6e:2x2x1
jax: 0.10.0
libtpu: 0.0.40
codegen_flags: <defaults>
</compile_context>

<pallas_src>
import functools
import math

import jax
import jax.numpy as jnp
from jax.experimental import pallas as pl
from jax.experimental.pallas import tpu as pltpu

_LANE = 128
_SUBLANE = 8


def _round_up(v, m):
    return (v + m - 1) // m * m


def _cdiv(a, b):
    return (a + b - 1) // b


# --------------------------------------------------------------------------- #
# Kernels
# --------------------------------------------------------------------------- #
def _recurrence(x, a_ref, b_ref, order):
    """Apply the order-N phase-distortion recurrence to a (R, W) f32 block."""
    W = x.shape[-1]
    x_cur = x
    y = x
    x_adv = None
    for i in range(order):
        a_i = a_ref[i]
        b_i = b_ref[i]
        if i == 0:
            # y == x initially, so roll(y, -1) == roll(x, -1): one XLU rotate serves both.
            x_adv = pltpu.roll(x_cur, shift=W - 1, axis=1)
            y_roll = x_adv
        else:
            y_roll = pltpu.roll(y, shift=W - 1, axis=1)
        # a*y + b*(x - y_roll) == b*x + a*y - b*y_roll, with one fewer vmul per element.
        y = a_i * y + b_i * (x_cur - y_roll)
        if i + 1 < order:
            # Advance x -> roll(x, -1).  The final (dead) roll is skipped explicitly.
            x_cur = x_adv if i == 0 else pltpu.roll(x_cur, shift=W - 1, axis=1)
    return y


def _pd_full_t_kernel(a_ref, b_ref, gain_ref, x_ref, o_ref, *, order):
    y = _recurrence(x_ref[...], a_ref, b_ref, order)
    o_ref[...] = jnp.tanh(gain_ref[0] * y)  # tanh stays on the EUP (free slot here)


def _pd_t_tiled_kernel(a_ref, b_ref, gain_ref, x_ref, x_next_ref, o_ref, *, order):
    # Extended slab: this T block plus the first 128 columns of the circularly-next
    # block.  Roll wraparound corrupts only the last `order` (<= 128) columns of the
    # extended slab, so the first t_tile output columns are exact.
    x = jnp.concatenate([x_ref[...], x_next_ref[...]], axis=-1)
    y = _recurrence(x, a_ref, b_ref, order)
    t_tile = o_ref.shape[-1]
    o_ref[...] = jnp.tanh(gain_ref[0] * y[:, :t_tile])


# --------------------------------------------------------------------------- #
# Tiling / compiler-parameter helpers
# --------------------------------------------------------------------------- #
def _compiler_params(block_bytes, dim_sem):
    # ~2x double-buffered in/out + ~4 live tile-sized temporaries in the unrolled loop.
    needed = 8 * block_bytes + (4 << 20)
    vmem_limit = int(min(max(needed, 16 << 20), 48 << 20))
    return pltpu.CompilerParams(dimension_semantics=dim_sem,
                                vmem_limit_bytes=vmem_limit)


def _choose_full_t_tile_rows(rows, T, target_block_bytes):
    bytes_per_row = T * 4
    padded_rows = _round_up(rows, _SUBLANE)
    tile = max(_SUBLANE, (target_block_bytes // bytes_per_row) // _SUBLANE * _SUBLANE)
    tile = min(tile, padded_rows)
    # Keep >= 2 grid steps when there are enough rows so both v7x TensorCores run.
    if padded_rows >= 2 * _SUBLANE:
        while tile > _SUBLANE and _cdiv(padded_rows, tile) < 2:
            tile = max(_SUBLANE, (tile // 2) // _SUBLANE * _SUBLANE)
    return tile


def _choose_t_tile(T, target_block_bytes):
    max_cols = max(_LANE, (target_block_bytes // (_SUBLANE * 4)) // _LANE * _LANE)
    t_tile = min(max_cols, T)
    t_tile = (t_tile // _LANE) * _LANE
    while T % t_tile != 0:
        t_tile -= _LANE
    return t_tile


def _choose_tiled_rows(rows, t_tile, target_block_bytes):
    padded_rows = _round_up(rows, _SUBLANE)
    bytes_per_row = t_tile * 4
    tile = max(_SUBLANE, (target_block_bytes // bytes_per_row) // _SUBLANE * _SUBLANE)
    return min(tile, padded_rows)


# --------------------------------------------------------------------------- #
# Wrappers
# --------------------------------------------------------------------------- #
def _phase_distortion_full_t(x2, a32, b32, gain_arr, order, target_block_bytes):
    rows, T = x2.shape
    tile_rows = _choose_full_t_tile_rows(rows, T, target_block_bytes)
    padded_rows = _round_up(rows, tile_rows)
    if padded_rows != rows:
        x2 = jnp.pad(x2, ((0, padded_rows - rows), (0, 0)))
    grid = (padded_rows // tile_rows,)
    block_bytes = tile_rows * T * 4

    out = pl.pallas_call(
        functools.partial(_pd_full_t_kernel, order=order),
        out_shape=jax.ShapeDtypeStruct((padded_rows, T), jnp.float32),
        grid=grid,
        in_specs=[
            pl.BlockSpec(memory_space=pltpu.MemorySpace.SMEM),   # a
            pl.BlockSpec(memory_space=pltpu.MemorySpace.SMEM),   # b
            pl.BlockSpec(memory_space=pltpu.MemorySpace.SMEM),   # gain
            pl.BlockSpec((tile_rows, T), lambda i: (i, 0)),      # x tile (full T)
        ],
        out_specs=pl.BlockSpec((tile_rows, T), lambda i: (i, 0)),
        compiler_params=_compiler_params(block_bytes, ("parallel",)),
    )(a32, b32, gain_arr, x2)
    return out[:rows]


def _phase_distortion_t_tiled(x2, a32, b32, gain_arr, order, t_tile, target_block_bytes):
    rows, T = x2.shape
    num_t = T // t_tile
    head_blocks = t_tile // _LANE
    tile_rows = _choose_tiled_rows(rows, t_tile, target_block_bytes)
    padded_rows = _round_up(rows, tile_rows)
    if padded_rows != rows:
        x2 = jnp.pad(x2, ((0, padded_rows - rows), (0, 0)))
    grid = (padded_rows // tile_rows, num_t)
    block_bytes = tile_rows * (t_tile + _LANE) * 4

    out = pl.pallas_call(
        functools.partial(_pd_t_tiled_kernel, order=order),
        out_shape=jax.ShapeDtypeStruct((padded_rows, T), jnp.float32),
        grid=grid,
        in_specs=[
            pl.BlockSpec(memory_space=pltpu.MemorySpace.SMEM),   # a
            pl.BlockSpec(memory_space=pltpu.MemorySpace.SMEM),   # b
            pl.BlockSpec(memory_space=pltpu.MemorySpace.SMEM),   # gain
            pl.BlockSpec((tile_rows, t_tile), lambda i, j: (i, j)),
            # First 128 columns of the circularly-next T block (handles the wrap).
            pl.BlockSpec((tile_rows, _LANE),
                         lambda i, j: (i, ((j + 1) % num_t) * head_blocks)),
        ],
        out_specs=pl.BlockSpec((tile_rows, t_tile), lambda i, j: (i, j)),
        compiler_params=_compiler_params(block_bytes, ("parallel", "parallel")),
    )(a32, b32, gain_arr, x2, x2)
    return out[:rows]


def phase_distortion(x, a, b, gain=1.0, *,
                     target_block_bytes=2 << 20,
                     max_full_t_block_bytes=4 << 20,
                     force_t_tile=None):
    """Pallas implementation of LearnablePhaseDistortion.forward.

    x: (..., T) array; the circular roll happens along the last axis.
    a, b: (order,) learnable coefficients.  gain: python float or traced scalar.
    """
    order = int(a.shape[0])
    orig_shape = x.shape
    orig_dtype = x.dtype
    T = x.shape[-1]
    rows = int(math.prod(x.shape[:-1])) if x.ndim > 1 else 1
    x2 = jnp.reshape(x, (rows, T)).astype(jnp.float32)
    a32 = a.astype(jnp.float32)
    b32 = b.astype(jnp.float32)
    gain_arr = jnp.asarray(gain, dtype=jnp.float32).reshape(1)

    # TODO(synk): optional bf16 HBM I/O (load/store bf16, compute f32) would give a
    # near-2x memory-bound speedup but changes numerics vs the f32 PyTorch module.

    can_tile_t = (T % _LANE == 0) and (order <= _LANE) and (T > _LANE)
    want_tile_t = (force_t_tile is not None) or (T * 4 * _SUBLANE > max_full_t_block_bytes)

    if can_tile_t and want_tile_t:
        if force_t_tile is not None:
            t_tile = int(force_t_tile)
            assert t_tile % _LANE == 0 and T % t_tile == 0, "bad forced t_tile"
        else:
            t_tile = _choose_t_tile(T, target_block_bytes)
        out2 = _phase_distortion_t_tiled(x2, a32, b32, gain_arr, order,
                                         t_tile, target_block_bytes)
    else:
        out2 = _phase_distortion_full_t(x2, a32, b32, gain_arr, order,
                                        target_block_bytes)

    return out2.reshape(orig_shape).astype(orig_dtype)


def phase_distortion_ref(x, a, b, gain=1.0):
    """Pure-JAX reference mirroring the PyTorch forward."""
    y = x
    for i in range(a.shape[0]):
        y = b[i] * x + a[i] * y - b[i] * jnp.roll(y, -1, axis=-1)
        x = jnp.roll(x, -1, axis=-1)
    return jnp.tanh(gain * y)


if __name__ == "__main__":
    key = jax.random.PRNGKey(0)
    k_x1, k_x2, k_x3, k_a, k_b = jax.random.split(key, 5)

    # --- Test 1: module-like small shape, full-T path (batch=2, channels=4, T=256) ---
    order = 2
    a = jax.random.uniform(k_a, (order,), dtype=jnp.float32)   # torch.rand(order)
    b = jax.random.uniform(k_b, (order,), dtype=jnp.float32)
    x1 = jax.random.normal(k_x1, (2, 4, 256), dtype=jnp.float32)

    out1 = jax.block_until_ready(phase_distortion(x1, a, b, gain=1.0))
    ref1 = phase_distortion_ref(x1, a, b, gain=1.0)
    assert out1.shape == x1.shape and out1.dtype == jnp.float32
    assert jnp.allclose(out1, ref1, rtol=1e-5, atol=1e-5), "mismatch (full-T path)"

    # --- Test 2: non-multiple-of-8 row count -> row padding + multi-step grid ---
    x2 = jax.random.normal(k_x2, (5, 4, 512), dtype=jnp.float32)   # rows = 20
    out2 = jax.block_until_ready(phase_distortion(x2, a, b, gain=0.7))
    ref2 = phase_distortion_ref(x2, a, b, gain=0.7)
    assert jnp.allclose(out2, ref2, rtol=1e-5, atol=1e-5), "mismatch (padded rows)"

    # --- Test 3: T-tiled path (forced small T tile) with order=3 ---
    order3 = 3
    a3 = jax.random.uniform(k_a, (order3,), dtype=jnp.float32)
    b3 = jax.random.uniform(k_b, (order3,), dtype=jnp.float32)
    x3 = jax.random.normal(k_x3, (2, 4, 1024), dtype=jnp.float32)
    out3 = jax.block_until_ready(phase_distortion(x3, a3, b3, gain=1.3, force_t_tile=256))
    ref3 = phase_distortion_ref(x3, a3, b3, gain=1.3)
    assert jnp.allclose(out3, ref3, rtol=1e-5, atol=1e-5), "mismatch (T-tiled path)"

    print("KERNEL_OK")
</pallas_src>

<mosaic_0001>
module attributes {stable_mosaic.version = 11 : i64} {
  func.func @_pd_full_t_kernel(%arg0: i32, %arg1: memref<2xf32, #tpu.memory_space<smem>>, %arg2: memref<2xf32, #tpu.memory_space<smem>>, %arg3: memref<1xf32, #tpu.memory_space<smem>>, %arg4: memref<8x256xf32, #tpu.memory_space<vmem>>, %arg5: memref<8x256xf32, #tpu.memory_space<vmem>>) attributes {dimension_semantics = [#tpu.dimension_semantics<parallel>], iteration_bounds = array<i64: 1>, scalar_prefetch = 0 : i64, scratch_operands = 0 : i64, tpu.core_type = #tpu.core_type<tc>, window_params = [{transform_indices = @transform_0, window_bounds = array<i64: 2>}, {transform_indices = @transform_1, window_bounds = array<i64: 2>}, {transform_indices = @transform_2, window_bounds = array<i64: 1>}, {transform_indices = @transform_3, window_bounds = array<i64: 8, 256>}, {transform_indices = @transform_4, window_bounds = array<i64: 8, 256>}]} {
    %c0 = arith.constant 0 : index
    %c0_0 = arith.constant 0 : index
    %0 = vector.load %arg4[%c0, %c0_0] : memref<8x256xf32, #tpu.memory_space<vmem>>, vector<8x256xf32>
    %c0_1 = arith.constant 0 : index
    %1 = memref.load %arg1[%c0_1] : memref<2xf32, #tpu.memory_space<smem>>
    %c0_2 = arith.constant 0 : index
    %2 = memref.load %arg2[%c0_2] : memref<2xf32, #tpu.memory_space<smem>>
    %c255_i32 = arith.constant 255 : i32
    %3 = tpu.dynamic_rotate %0 by %c255_i32 dim 1 : vector<8x256xf32>, i32 -> vector<8x256xf32>
    %4 = vector.broadcast %1 : f32 to vector<8x256xf32>
    %5 = arith.mulf %4, %0 : vector<8x256xf32>
    %6 = arith.subf %0, %3 : vector<8x256xf32>
    %7 = vector.broadcast %2 : f32 to vector<8x256xf32>
    %8 = arith.mulf %7, %6 : vector<8x256xf32>
    %9 = arith.addf %5, %8 : vector<8x256xf32>
    %c1 = arith.constant 1 : index
    %10 = memref.load %arg1[%c1] : memref<2xf32, #tpu.memory_space<smem>>
    %c1_3 = arith.constant 1 : index
    %11 = memref.load %arg2[%c1_3] : memref<2xf32, #tpu.memory_space<smem>>
    %c255_i32_4 = arith.constant 255 : i32
    %12 = tpu.dynamic_rotate %9 by %c255_i32_4 dim 1 : vector<8x256xf32>, i32 -> vector<8x256xf32>
    %13 = vector.broadcast %10 : f32 to vector<8x256xf32>
    %14 = arith.mulf %13, %9 : vector<8x256xf32>
    %15 = arith.subf %3, %12 : vector<8x256xf32>
    %16 = vector.broadcast %11 : f32 to vector<8x256xf32>
    %17 = arith.mulf %16, %15 : vector<8x256xf32>
    %18 = arith.addf %14, %17 : vector<8x256xf32>
    %c0_5 = arith.constant 0 : index
    %19 = memref.load %arg3[%c0_5] : memref<1xf32, #tpu.memory_space<smem>>
    %20 = vector.broadcast %19 : f32 to vector<8x256xf32>
    %21 = arith.mulf %20, %18 : vector<8x256xf32>
    %22 = math.tanh %21 : vector<8x256xf32>
    %c0_6 = arith.constant 0 : index
    %c0_7 = arith.constant 0 : index
    %23 = vector.load %arg5[%c0_6, %c0_7] : memref<8x256xf32, #tpu.memory_space<vmem>>, vector<8x256xf32>
    tpu.vector_store %arg5[%c0_6, %c0_7], %22 {strides = array<i32>} : memref<8x256xf32, #tpu.memory_space<vmem>>, vector<8x256xf32>,
    return
  }
  func.func @transform_0(%arg0: i32) -> i32 {
    %c0_i32 = arith.constant 0 : i32
    %c0_i32_0 = arith.constant 0 : i32
    return %c0_i32 : i32
  }
  func.func @transform_1(%arg0: i32) -> i32 {
    %c0_i32 = arith.constant 0 : i32
    %c0_i32_0 = arith.constant 0 : i32
    return %c0_i32 : i32
  }
  func.func @transform_2(%arg0: i32) -> i32 {
    %c0_i32 = arith.constant 0 : i32
    %c0_i32_0 = arith.constant 0 : i32
    return %c0_i32 : i32
  }
  func.func @transform_3(%arg0: i32) -> (i32, i32) {
    %c0_i32 = arith.constant 0 : i32
    %c0_i32_0 = arith.constant 0 : i32
    return %arg0, %c0_i32 : i32, i32
  }
  func.func @transform_4(%arg0: i32) -> (i32, i32) {
    %c0_i32 = arith.constant 0 : i32
    %c0_i32_0 = arith.constant 0 : i32
    return %arg0, %c0_i32 : i32, i32
  }
}

</mosaic_0001>

<llo_original>
// kernel: tpu_custom_call.1
$region0: #{tpu_custom_call.1}
  #allocation0 [shape = 'u32[]', space=smem, size = 0x4, offset = 0x4, fixed_abs, tag = 'smem constant byte address 0x4 - core index']
  #allocation1 [shape = 'u32[144,128]{1,0:T(1,128)}', space=vmem, size = 0x12000, scoped, tag = 'internal scratch']
  #allocation2 [shape = 'f32[1]{0:T(128)S(6)}', space=smem, size = 0x200, scoped, tag = 'scoped memory for tpu_custom_call.1']
  %s0 = inlined_call_operand.vmem [shape: f32[2], index: 0, kind: input, shape index: {}]
  %s1 = inlined_call_operand.vmem [shape: f32[2], index: 1, kind: input, shape index: {}]
  %s2 = inlined_call_operand.<no memory space> [shape: f32[1], index: 2, kind: input, shape index: {}]
  %s3 = inlined_call_operand.hbm [shape: f32[8,256], index: 3, kind: input, shape index: {}]
  %s4 = inlined_call_operand.hbm [shape: f32[8,256], index: 4, kind: output, shape index: {}]
  %s5 = sld [smem:[#allocation0]]
  $region38: #{tpu_custom_call.1} parent=0
    _
  %s7 = ssub.s32 1, %s5
  %s8 = scalar_select 0, %s7, %s5
  %9 = sst [smem:[#allocation2]] %s2
  $region1: #{tpu_custom_call.1} parent=0
    #allocation3 [shape = 'u8[512]{0}', space=smem, size = 0x200, scoped, tag = 'input window, operand 0, single buffered']
    #allocation4 [shape = 's32[1]{0}', space=sflag, size = 0x4, scoped, tag = 'scoped memory for tpu_custom_call.1']
    #allocation5 [shape = 's32[1]{0}', space=sflag, size = 0x4, scoped, tag = 'scoped memory for tpu_custom_call.1']
    #allocation6 [shape = 's32[1]{0}', space=sflag, size = 0x4, scoped, tag = 'scoped memory for tpu_custom_call.1']
    #allocation7 [shape = 'u8[512]{0}', space=smem, size = 0x200, scoped, tag = 'input window, operand 1, single buffered']
    #allocation8 [shape = 's32[1]{0}', space=sflag, size = 0x4, scoped, tag = 'scoped memory for tpu_custom_call.1']
    #allocation9 [shape = 'u8[8192]{0}', space=vmem, size = 0x2000, scoped, tag = 'input window, operand 3, single buffered']
    #allocation10 [shape = 'u8[8192]{0}', space=vmem, size = 0x2000, scoped, tag = 'output window, operand 0, single buffered']
    %10 = vsyncpa [#allocation6], 0
    %11 = vsyncpa [#allocation8], 0
    %12 = vsyncpa [#allocation4], 0
    %13 = vsyncpa [#allocation5], 0
    // Predicated region
    $region2: #{tpu_custom_call.1} parent=1 // pred_check
      _
    $region3: #{tpu_custom_call.1} parent=1 // pred_check_branch
      %15 = sbr.rel (0) target = $region5
    $region4: #{tpu_custom_call.1} parent=1 // pred_region
      %s17 = ssub.s32 16, 16
      %18 = vsyncadd [#allocation6], %s17
      %s20 = sshll.u32 %s0, 4
      %s21 = int_to_ptr.vmem [resolvable:$true] %s20
      %23 = dma.vmem_to_smem %s21, 16, [#allocation3], [#allocation6]
    $region5: #{tpu_custom_call.1} parent=1 // pred_fallthru
      _
    // Predicated region
    $region6: #{tpu_custom_call.1} parent=1 // pred_check
      _
    $region7: #{tpu_custom_call.1} parent=1 // pred_check_branch
      %25 = sbr.rel (0) target = $region9
    $region8: #{tpu_custom_call.1} parent=1 // pred_region
      %s27 = ssub.s32 16, 16
      %28 = vsyncadd [#allocation8], %s27
      %s30 = sshll.u32 %s1, 4
      %s31 = int_to_ptr.vmem [resolvable:$true] %s30
      %33 = dma.vmem_to_smem %s31, 16, [#allocation7], [#allocation8]
    $region9: #{tpu_custom_call.1} parent=1 // pred_fallthru
      _
    // Predicated region
    $region10: #{tpu_custom_call.1} parent=1 // pred_check
      _
    $region11: #{tpu_custom_call.1} parent=1 // pred_check_branch
      %35 = sbr.rel (0) target = $region13
    $region12: #{tpu_custom_call.1} parent=1 // pred_region
      _
    $region13: #{tpu_custom_call.1} parent=1 // pred_fallthru
      _
    // Predicated region
    $region14: #{tpu_custom_call.1} parent=1 // pred_check
      _
    $region15: #{tpu_custom_call.1} parent=1 // pred_check_branch
      %37 = sbr.rel (0) target = $region17
    $region16: #{tpu_custom_call.1} parent=1 // pred_region
      %s39 = ssub.s32 256, 256
      %40 = vsyncadd [#allocation4], %s39
      %s42 = sshll.u32 [#allocation9], 4
      %s43 = int_to_ptr.vmem [resolvable:$true] %s42
      %45 = dma.hbm_to_vmem [thread:$0]  %s3, 256, %s43, [#allocation4]
    $region17: #{tpu_custom_call.1} parent=1 // pred_fallthru
      _
    // Predicated region
    $region18: #{tpu_custom_call.1} parent=1 // pred_check
      _
    $region19: #{tpu_custom_call.1} parent=1 // pred_check_branch
      %47 = sbr.rel (0) target = $region21
    $region20: #{tpu_custom_call.1} parent=1 // pred_region
      %48 = dma.done [#allocation6], 16
    $region21: #{tpu_custom_call.1} parent=1 // pred_fallthru
      _
    // Predicated region
    $region22: #{tpu_custom_call.1} parent=1 // pred_check
      _
    $region23: #{tpu_custom_call.1} parent=1 // pred_check_branch
      %50 = sbr.rel (0) target = $region25
    $region24: #{tpu_custom_call.1} parent=1 // pred_region
      %51 = dma.done [#allocation8], 16
    $region25: #{tpu_custom_call.1} parent=1 // pred_fallthru
      _
    // Predicated region
    $region26: #{tpu_custom_call.1} parent=1 // pred_check
      _
    $region27: #{tpu_custom_call.1} parent=1 // pred_check_branch
      %53 = sbr.rel (0) target = $region29
    $region28: #{tpu_custom_call.1} parent=1 // pred_region
      %54 = dma.done [#allocation4], 256
    $region29: #{tpu_custom_call.1} parent=1 // pred_fallthru
      _
    %55 = sfence
    %v56 = vld [vmem:[#allocation9] sm:$0xff]
    %v57 = vld [vmem:[#allocation9 + $0x8] sm:$0xff]
    %s58 = sld [smem:[#allocation3]]
    %s59 = sld [smem:[#allocation7]]
    %60 = vrot.lane.b32.xlu0 %v56, 127
    %v61 = vpop.permute.xlu0 %60
    %62 = vrot.lane.b32.xlu0 %v57, 127
    %v63 = vpop.permute.xlu0 %62
    %v64 = vlaneseq
    %v65 = vand.u32 %v64, 127
    %vm66 = vcmp.lt.s32.totalorder %v65, 127
    %v67 = vsel %vm66, %v61, %v63
    %v68 = vsel %vm66, %v63, %v61
    %v69 = vstv %s58
    %v70 = vmul.f32 %v69, %v56
    %v71 = vmul.f32 %v69, %v57
    %v72 = vsub.f32 %v56, %v67
    %v73 = vsub.f32 %v57, %v68
    %v74 = vstv %s59
    %v75 = vmul.f32 %v74, %v72
    %v76 = vmul.f32 %v74, %v73
    %v77 = vadd.f32 %v70, %v75
    %v78 = vadd.f32 %v71, %v76
    %s79 = sld [smem:[#allocation3 + $0x1]]
    %s80 = sld [smem:[#allocation7 + $0x1]]
    %81 = vrot.lane.b32.xlu0 %v77, 127
    %v82 = vpop.permute.xlu0 %81
    %83 = vrot.lane.b32.xlu0 %v78, 127
    %v84 = vpop.permute.xlu0 %83
    %v85 = vsel %vm66, %v82, %v84
    %v86 = vsel %vm66, %v84, %v82
    %v87 = vstv %s79
    %v88 = vmul.f32 %v87, %v77
    %v89 = vmul.f32 %v87, %v78
    %v90 = vsub.f32 %v67, %v85
    %v91 = vsub.f32 %v68, %v86
    %v92 = vstv %s80
    %v93 = vmul.f32 %v92, %v90
    %v94 = vmul.f32 %v92, %v91
    %v95 = vadd.f32 %v88, %v93
    %v96 = vadd.f32 %v89, %v94
    %s97 = sld [smem:[#allocation2]]
    %v98 = vstv %s97
    %v99 = vmul.f32 %v98, %v95
    %v100 = vmul.f32 %v98, %v96
    %v101 = vtanh.pop %v99
    %v102 = vtanh.pop %v100
    %103 = vst [vmem:[#allocation10] sm:$0xff] %v101
    %104 = vst [vmem:[#allocation10 + $0x8] sm:$0xff] %v102
    // Predicated region
    $region30: #{tpu_custom_call.1} parent=1 // pred_check
      _
    $region31: #{tpu_custom_call.1} parent=1 // pred_check_branch
      %106 = sbr.rel (0) target = $region33
    $region32: #{tpu_custom_call.1} parent=1 // pred_region
      %s108 = ssub.s32 256, 256
      %109 = vsyncadd [#allocation5], %s108
      %s111 = sshll.u32 [#allocation10], 4
      %s112 = int_to_ptr.vmem [resolvable:$true] %s111
      %114 = dma.vmem_to_hbm [thread:$0]  %s112, 256, %s4, [#allocation5]
    $region33: #{tpu_custom_call.1} parent=1 // pred_fallthru
      _
    // Predicated region
    $region34: #{tpu_custom_call.1} parent=1 // pred_check
      _
    $region35: #{tpu_custom_call.1} parent=1 // pred_check_branch
      %116 = sbr.rel (0) target = $region37
    $region36: #{tpu_custom_call.1} parent=1 // pred_region
      %117 = dma.done [#allocation5], 256
    $region37: #{tpu_custom_call.1} parent=1 // pred_fallthru
      _
    %118 = vsyncpa [#allocation4], 1
    %119 = vsyncpa [#allocation5], 1
    %120 = vsyncpa [#allocation6], 1
    %121 = vsyncpa [#allocation8], 1

</llo_original>
